<compile_context>
chip_gen: v6e
topology: v6e:2x2x1
jax: 0.10.0
libtpu: 0.0.40
codegen_flags: <defaults>
</compile_context>

<pallas_src>
import math
import jax
import jax.numpy as jnp
from jax.experimental import pallas as pl
from jax.experimental.pallas import tpu as pltpu

BETA = 1.0
THRESHOLD = 20.0


# --------------------------------------------------------------------------- kernels
def _softplus(z):
    # F.softplus(z, beta=1, threshold=20):  z if z*beta > threshold else log1p(exp(beta*z))/beta
    zb = z * BETA
    sp = jnp.log1p(jnp.exp(jnp.minimum(zb, THRESHOLD))) * (1.0 / BETA)
    return jnp.where(zb > THRESHOLD, z, sp)


def _fm_kernel(x_ref, w_ref, b_ref, o_ref):
    # Feature-major: x_ref (D, TB) native dtype, w_ref (D, 1) f32, b_ref (1,) f32 SMEM,
    # o_ref (1, TB) f32.  Batch lives on lanes -> unmasked lane-dense stores, and the
    # entire epilogue runs at full lane utilization.
    x = x_ref[...].astype(jnp.float32)                       # upcast under the DMA
    z = jnp.sum(x * w_ref[...], axis=0, keepdims=True) + b_ref[0]   # sublane reduce -> (1, TB)
    o_ref[...] = _softplus(z).astype(o_ref.dtype)


def _rm_kernel(x_ref, w_ref, b_ref, o_ref):
    # Row-major (large D): x_ref (TB, D) native dtype, w_ref (1, D) f32, o_ref (TB, 1) f32.
    x = x_ref[...].astype(jnp.float32)
    z = jnp.sum(x * w_ref[...], axis=-1, keepdims=True) + b_ref[0]  # lane reduce -> (TB, 1)
    o_ref[...] = _softplus(z).astype(o_ref.dtype)


# --------------------------------------------------------------------------- tiling
def _round_up(a, m):
    return -(-a // m) * m


def _budgets():
    """Return (tile_budget_bytes, vmem_limit_bytes), generation-conditional."""
    try:
        fn = getattr(pltpu, "get_tpu_info", None)
        vmem_phys = int(getattr(fn(), "vmem_capacity_bytes", 0)) if fn is not None else 0
    except Exception:
        vmem_phys = 0
    if vmem_phys <= 0:
        vmem_phys = 64 << 20  # conservative (v7x-class) default if the query is unavailable
    if vmem_phys <= (64 << 20):
        # v7x: 64 MiB physical per TC, 2 TCs -> keep double-buffered tiles well inside scope.
        return 16 << 20, 40 << 20
    # v5e / v6e: 128 MiB physical, single TC -> larger tiles amortize per-step overhead.
    return 40 << 20, 64 << 20


def _fm_tile(B, D, itemsize, tile_budget, block_batch):
    """Batch tile (lanes) for the feature-major path."""
    sub = max(8, 32 // itemsize)                                # sublane pack: f32 8, bf16 16, i8 32
    bytes_per_lane = _round_up(D, sub) * itemsize + 8 * 4       # x column + padded f32 out column
    if block_batch is not None:
        tb = min(block_batch, B)
        if tb < B:
            tb = max(128, _round_up(tb, 128))                   # lane dim must be 128-aligned
        return min(tb, B)
    tb = (tile_budget // (2 * bytes_per_lane)) // 128 * 128     # double-buffered byte budget
    if tb >= B:
        # Whole batch fits one step.  If a 2-way split still moves >= ~1 MiB per step,
        # use 2 steps so the "parallel" axis can occupy both v7x TensorCores.
        half = _round_up(pl.cdiv(B, 2), 128)
        if half < B and half * bytes_per_lane >= (1 << 20):
            return half
        return B
    return max(tb, 128)


def _rm_tile(B, D, itemsize, tile_budget, block_batch):
    """Batch tile (sublanes) for the row-major path."""
    sub = max(8, 32 // itemsize)
    bytes_per_row = _round_up(D, 128) * itemsize + 128 * 4      # x row + lane-padded out row
    if block_batch is not None:
        tb = min(block_batch, B)
        if tb < B:
            tb = max(sub, _round_up(tb, sub))
        return min(tb, B)
    tb = (tile_budget // (2 * bytes_per_row)) // sub * sub
    if tb >= B:
        return B
    return max(tb, sub)


# --------------------------------------------------------------------------- wrapper
def shallownet_forward(x, w, b, *, block_batch=None):
    """x: (B, D) f32/bf16, w: (1, D), b: (1,) -> (B, 1) f32."""
    B, D = x.shape
    itemsize = jnp.dtype(x.dtype).itemsize
    w = jnp.asarray(w, jnp.float32).reshape(1, D)
    b = jnp.asarray(b, jnp.float32).reshape(1)
    tile_budget, vmem_limit = _budgets()

    cost = pl.CostEstimate(
        flops=2 * B * D + 6 * B,
        transcendentals=2 * B,
        bytes_accessed=B * D * itemsize + B * 4 + D * 4 + 4,
    )
    cparams = pltpu.CompilerParams(
        # Batch tiles are independent -> shard across TensorCores (v7x).
        dimension_semantics=("parallel",),
        vmem_limit_bytes=vmem_limit,
    )

    if D * itemsize <= 512:
        # ---------------- feature-major path (small D): batch on lanes ----------------
        tb = _fm_tile(B, D, itemsize, tile_budget, block_batch)
        grid = (pl.cdiv(B, tb),)
        xt = x.T                         # (D, B): one-off layout change outside the kernel
        wt = w.reshape(D, 1)             # broadcasts across lanes inside the kernel
        out = pl.pallas_call(
            _fm_kernel,
            out_shape=jax.ShapeDtypeStruct((1, B), jnp.float32),
            grid=grid,
            in_specs=[
                pl.BlockSpec((D, tb), lambda i: (0, i)),             # stream x, lane-dense DMA
                pl.BlockSpec((D, 1), lambda i: (0, 0)),              # weight resident in VMEM
                pl.BlockSpec(memory_space=pltpu.MemorySpace.SMEM),   # bias as SMEM scalar
            ],
            out_specs=pl.BlockSpec((1, tb), lambda i: (0, i)),       # lane-dense output
            compiler_params=cparams,
            cost_estimate=cost,
        )(xt, wt, b)
        return out.reshape(B, 1)

    # ---------------- row-major path (large D): D already lane-dense -------------------
    # TODO(synk): add a K (feature) grid axis + pl.when-initialized accumulator for D so
    # large that a single double-buffered (TB, D) tile no longer fits scoped VMEM.
    tb = _rm_tile(B, D, itemsize, tile_budget, block_batch)
    grid = (pl.cdiv(B, tb),)
    out = pl.pallas_call(
        _rm_kernel,
        out_shape=jax.ShapeDtypeStruct((B, 1), jnp.float32),
        grid=grid,
        in_specs=[
            pl.BlockSpec((tb, D), lambda i: (i, 0)),
            pl.BlockSpec((1, D), lambda i: (0, 0)),
            pl.BlockSpec(memory_space=pltpu.MemorySpace.SMEM),
        ],
        out_specs=pl.BlockSpec((tb, 1), lambda i: (i, 0)),
        compiler_params=cparams,
        cost_estimate=cost,
    )(x, w, b)
    return out


# --------------------------------------------------------------------------- init / reference
def init_params(key, input_dim):
    """nn.Linear reset_parameters: kaiming_uniform_(a=sqrt(5)) => U(-1/sqrt(fan_in), 1/sqrt(fan_in))."""
    kw, kb = jax.random.split(key)
    bound = 1.0 / math.sqrt(input_dim)
    w = jax.random.uniform(kw, (1, input_dim), jnp.float32, minval=-bound, maxval=bound)
    b = jax.random.uniform(kb, (1,), jnp.float32, minval=-bound, maxval=bound)
    return w, b


def reference_forward(x, w, b):
    z = x.astype(jnp.float32) @ w.astype(jnp.float32).T + b.astype(jnp.float32)[None, :]
    zb = z * BETA
    sp = jnp.log1p(jnp.exp(jnp.minimum(zb, THRESHOLD))) / BETA
    return jnp.where(zb > THRESHOLD, z, sp)


# --------------------------------------------------------------------------- demo / checks
if __name__ == "__main__":
    key = jax.random.PRNGKey(0)
    k_x, k_p = jax.random.split(key)

    # Module defaults: input_dim=2, out_features=1.
    batch, input_dim = 8, 2
    x = jax.random.normal(k_x, (batch, input_dim), jnp.float32)
    w, b = init_params(k_p, input_dim)

    y = shallownet_forward(x, w, b)
    jax.block_until_ready(y)
    y_ref = reference_forward(x, w, b)
    assert y.shape == (batch, 1)
    assert jnp.allclose(y, y_ref, atol=1e-5, rtol=1e-5)

    # Ragged multi-tile batch on the feature-major path (cdiv grid, masked last block, no pad).
    batch2 = 300
    x2 = jax.random.normal(k_x, (batch2, input_dim), jnp.float32)
    y2 = shallownet_forward(x2, w, b, block_batch=128)
    jax.block_until_ready(y2)
    assert y2.shape == (batch2, 1)
    assert jnp.allclose(y2, reference_forward(x2, w, b), atol=1e-5, rtol=1e-5)

    # Row-major (large-D) fallback path.
    batch3, d3 = 64, 384
    x3 = jax.random.normal(k_x, (batch3, d3), jnp.float32)
    w3, b3 = init_params(k_p, d3)
    y3 = shallownet_forward(x3, w3, b3)
    jax.block_until_ready(y3)
    assert y3.shape == (batch3, 1)
    assert jnp.allclose(y3, reference_forward(x3, w3, b3), atol=1e-4, rtol=1e-4)

    print("KERNEL_OK")
</pallas_src>

<mosaic_0001>
module attributes {stable_mosaic.version = 11 : i64} {
  func.func @_fm_kernel(%arg0: i32, %arg1: memref<2x8xf32, #tpu.memory_space<vmem>>, %arg2: memref<2x1xf32, #tpu.memory_space<vmem>>, %arg3: memref<1xf32, #tpu.memory_space<smem>>, %arg4: memref<1x8xf32, #tpu.memory_space<vmem>>) attributes {dimension_semantics = [#tpu.dimension_semantics<parallel>], iteration_bounds = array<i64: 1>, scalar_prefetch = 0 : i64, scratch_operands = 0 : i64, tpu.core_type = #tpu.core_type<tc>, window_params = [{transform_indices = @transform_0, window_bounds = array<i64: 2, 8>}, {pipeline_mode = #tpu.pipeline_mode<synchronous>, transform_indices = @transform_1, window_bounds = array<i64: 2, 1>}, {transform_indices = @transform_2, window_bounds = array<i64: 1>}, {transform_indices = @transform_3, window_bounds = array<i64: 1, 8>}]} {
    %c0 = arith.constant 0 : index
    %c0_0 = arith.constant 0 : index
    %0 = vector.load %arg1[%c0, %c0_0] : memref<2x8xf32, #tpu.memory_space<vmem>>, vector<2x8xf32>
    %c0_1 = arith.constant 0 : index
    %c0_2 = arith.constant 0 : index
    %1 = vector.load %arg2[%c0_1, %c0_2] : memref<2x1xf32, #tpu.memory_space<vmem>>, vector<2x1xf32>
    %2 = vector.broadcast %1 : vector<2x1xf32> to vector<2x8xf32>
    %3 = arith.mulf %0, %2 : vector<2x8xf32>
    %cst = arith.constant dense<0.000000e+00> : vector<8xf32>
    %4 = vector.multi_reduction <add>, %3, %cst [0] : vector<2x8xf32> to vector<8xf32>
    %5 = vector.shape_cast %4 : vector<8xf32> to vector<1x8xf32>
    %c0_3 = arith.constant 0 : index
    %6 = memref.load %arg3[%c0_3] : memref<1xf32, #tpu.memory_space<smem>>
    %7 = vector.broadcast %6 : f32 to vector<1x8xf32>
    %8 = arith.addf %5, %7 : vector<1x8xf32>
    %cst_4 = arith.constant 1.000000e+00 : f32
    %9 = vector.broadcast %cst_4 : f32 to vector<1x8xf32>
    %10 = arith.mulf %8, %9 : vector<1x8xf32>
    %cst_5 = arith.constant 2.000000e+01 : f32
    %11 = vector.broadcast %cst_5 : f32 to vector<1x8xf32>
    %12 = arith.minimumf %10, %11 : vector<1x8xf32>
    %13 = math.exp %12 : vector<1x8xf32>
    %14 = math.log1p %13 : vector<1x8xf32>
    %cst_6 = arith.constant 1.000000e+00 : f32
    %15 = vector.broadcast %cst_6 : f32 to vector<1x8xf32>
    %16 = arith.mulf %14, %15 : vector<1x8xf32>
    %cst_7 = arith.constant 2.000000e+01 : f32
    %17 = vector.broadcast %cst_7 : f32 to vector<1x8xf32>
    %18 = arith.cmpf ogt, %10, %17 : vector<1x8xf32>
    %19 = arith.select %18, %8, %16 : vector<1x8xi1>, vector<1x8xf32>
    %c0_8 = arith.constant 0 : index
    %c0_9 = arith.constant 0 : index
    %20 = vector.load %arg4[%c0_8, %c0_9] : memref<1x8xf32, #tpu.memory_space<vmem>>, vector<1x8xf32>
    tpu.vector_store %arg4[%c0_8, %c0_9], %19 {strides = array<i32>} : memref<1x8xf32, #tpu.memory_space<vmem>>, vector<1x8xf32>,
    return
  }
  func.func @transform_0(%arg0: i32) -> (i32, i32) {
    %c0_i32 = arith.constant 0 : i32
    %c0_i32_0 = arith.constant 0 : i32
    return %c0_i32, %arg0 : i32, i32
  }
  func.func @transform_1(%arg0: i32) -> (i32, i32) {
    %c0_i32 = arith.constant 0 : i32
    %c0_i32_0 = arith.constant 0 : i32
    %c0_i32_1 = arith.constant 0 : i32
    return %c0_i32, %c0_i32_0 : i32, i32
  }
  func.func @transform_2(%arg0: i32) -> i32 {
    %c0_i32 = arith.constant 0 : i32
    %c0_i32_0 = arith.constant 0 : i32
    return %c0_i32 : i32
  }
  func.func @transform_3(%arg0: i32) -> (i32, i32) {
    %c0_i32 = arith.constant 0 : i32
    %c0_i32_0 = arith.constant 0 : i32
    return %c0_i32, %arg0 : i32, i32
  }
}

</mosaic_0001>

<llo_original>
// kernel: tpu_custom_call.1
$region0: #{tpu_custom_call.1}
  #allocation0 [shape = 'u32[]', space=smem, size = 0x4, offset = 0x4, fixed_abs, tag = 'smem constant byte address 0x4 - core index']
  #allocation1 [shape = 'u32[144,128]{1,0:T(1,128)}', space=vmem, size = 0x12000, scoped, tag = 'internal scratch']
  #allocation2 [shape = 'f32[1]{0:T(128)S(6)}', space=smem, size = 0x200, scoped, tag = 'scoped memory for tpu_custom_call.1']
  %s0 = inlined_call_operand.vmem [shape: f32[2,8], index: 0, kind: input, shape index: {}]
  %s1 = inlined_call_operand.vmem [shape: f32[2,1], index: 1, kind: input, shape index: {}]
  %s2 = inlined_call_operand.<no memory space> [shape: f32[1], index: 2, kind: input, shape index: {}]
  %s3 = inlined_call_operand.hbm [shape: f32[1,8], index: 3, kind: output, shape index: {}]
  %s4 = sld [smem:[#allocation0]]
  $region22: #{tpu_custom_call.1} parent=0
    _
  %s6 = ssub.s32 1, %s4
  %s7 = scalar_select 0, %s6, %s4
  %8 = sst [smem:[#allocation2]] %s2
  $region1: #{tpu_custom_call.1} parent=0
    #allocation3 [shape = 'u8[512]{0}', space=vmem, size = 0x400, scoped, tag = 'output window, operand 0, single buffered']
    #allocation4 [shape = 's32[1]{0}', space=sflag, size = 0x4, scoped, tag = 'scoped memory for tpu_custom_call.1']
    %9 = vsyncpa [#allocation4], 0
    // Predicated region
    $region2: #{tpu_custom_call.1} parent=1 // pred_check
      _
    $region3: #{tpu_custom_call.1} parent=1 // pred_check_branch
      %11 = sbr.rel (0) target = $region5
    $region4: #{tpu_custom_call.1} parent=1 // pred_region
      _
    $region5: #{tpu_custom_call.1} parent=1 // pred_fallthru
      _
    // Predicated region
    $region6: #{tpu_custom_call.1} parent=1 // pred_check
      _
    $region7: #{tpu_custom_call.1} parent=1 // pred_check_branch
      %13 = sbr.rel (0) target = $region9
    $region8: #{tpu_custom_call.1} parent=1 // pred_region
      _
    $region9: #{tpu_custom_call.1} parent=1 // pred_fallthru
      _
    // Predicated region
    $region10: #{tpu_custom_call.1} parent=1 // pred_check
      _
    $region11: #{tpu_custom_call.1} parent=1 // pred_check_branch
      %15 = sbr.rel (0) target = $region13
    $region12: #{tpu_custom_call.1} parent=1 // pred_region
      _
    $region13: #{tpu_custom_call.1} parent=1 // pred_fallthru
      _
    %v16 = vld [vmem:[%s0] sm:$0x3]
    %v17 = vld [vmem:[%s1] sm:$0x3]
    %19 = vset.pattern.permute.xlu0 0
    %20 = vperm.xlu0 %19, %v17
    %v21 = vpop.permute.xlu0 %20
    %v23 = vmul.f32 %v16, %v21
    %vm24 = vcmask 58368
    %v25 = vsel %vm24, %v23, 0.0
    %v26 = vrot.slane %v25, 4
    %v27 = vadd.f32 %v25, %v26
    %v28 = vrot.slane %v27, 2
    %v29 = vadd.f32 %v27, %v28
    %v30 = vrot.slane %v29, 1
    %v31 = vadd.f32 %v29, %v30
    %s32 = sld [smem:[#allocation2]]
    %v33 = vstv %s32
    %v34 = vadd.f32 %v31, %v33
    %v35 = vmin.f32 %v34, 20.0
    %v36 = vmul.f32 %v35, 1.442695
    %v37 = vpow.pop %v36
    %v38 = vadd.f32 %v37, 1.0
    %v39 = vlog2.pop %v38
    %v40 = vmul.f32 %v39, 0.6931472
    %v41 = vmul.f32 -0.5, %v37
    %v42 = vadd.f32 %v41, 1.0
    %v43 = vmul.f32 %v42, %v37
    %v44 = vand.u32 2147483647, %v37
    %vm45 = vcmp.lt.f32.partialorder %v44, 0.0004427343
    %v46 = vsel %vm45, %v43, %v40
    %vm47 = vcmp.gt.f32.partialorder %v34, 20.0
    %v48 = vsel %vm47, %v34, %v46
    %vm49 = vcmask 57344
    %50 = vst.msk [vmem:[#allocation3] sm:$0x1] %vm49, %v48
    // Predicated region
    $region14: #{tpu_custom_call.1} parent=1 // pred_check
      _
    $region15: #{tpu_custom_call.1} parent=1 // pred_check_branch
      %52 = sbr.rel (0) target = $region17
    $region16: #{tpu_custom_call.1} parent=1 // pred_region
      %s54 = ssub.s32 16, 16
      %55 = vsyncadd [#allocation4], %s54
      %s57 = sshll.u32 [#allocation3], 4
      %s58 = int_to_ptr.vmem [resolvable:$true] %s57
      %60 = dma.vmem_to_hbm [thread:$0]  %s58, 16, %s3, [#allocation4]
    $region17: #{tpu_custom_call.1} parent=1 // pred_fallthru
      _
    // Predicated region
    $region18: #{tpu_custom_call.1} parent=1 // pred_check
      _
    $region19: #{tpu_custom_call.1} parent=1 // pred_check_branch
      %62 = sbr.rel (0) target = $region21
    $region20: #{tpu_custom_call.1} parent=1 // pred_region
      %63 = dma.done [#allocation4], 16
    $region21: #{tpu_custom_call.1} parent=1 // pred_fallthru
      _
    %64 = vsyncpa [#allocation4], 1

</llo_original>
